<compile_context>
chip_gen: v7x
topology: tpu7x:2x2x1
jax: 0.10.0
libtpu: 0.0.40
codegen_flags: <defaults>
</compile_context>

<pallas_src>
import functools

import jax
import jax.numpy as jnp
from jax.experimental import pallas as pl
from jax.experimental.pallas import tpu as pltpu

EPS = 1e-5  # nn.BatchNorm2d default


def _basic_block_kernel(x_ref, w1b_ref, w2b_ref, g1_ref, be1_ref, g2_ref,
                        be2_ref, out_ref, *, img_h, channels):
    """Fused conv3x3 -> BN -> ReLU -> conv3x3 -> BN -> +residual -> ReLU.

    Activation layout: rows = (n, h), lanes = (w, c)  ->  (N*H, W*C).
    BN gamma/beta arrive pre-broadcast as lane-dense (1, W*C) rows.
    """
    NH, WC = x_ref.shape
    C = channels
    H = img_h
    W = WC // C
    inv_nhw = 1.0 / float(NH * W)

    row = jax.lax.broadcasted_iota(jnp.int32, (NH, 1), 0)
    hrow = row % H                       # image-row index of each slab row

    def dy_slabs(v):
        # (NH, WC) f32 -> three bf16 slabs holding image rows h-1, h, h+1
        # (zero outside the image; the masks also stop the circular roll from
        # leaking across batch images).  pltpu.roll requires a non-negative
        # shift, so "roll by -1" is written as "roll by NH-1".
        up = jnp.where(hrow == 0, 0.0, pltpu.roll(v, shift=1, axis=0))
        dn = jnp.where(hrow == H - 1, 0.0,
                       pltpu.roll(v, shift=NH - 1, axis=0))
        return (up.astype(jnp.bfloat16), v.astype(jnp.bfloat16),
                dn.astype(jnp.bfloat16))

    def conv3x3(v, wb_ref):
        # 3x3 conv, stride 1, pad 1: 3 banded bf16 matmuls, f32 accumulation.
        s_up, s_mid, s_dn = dy_slabs(v)
        acc = jnp.dot(s_up, wb_ref[0], preferred_element_type=jnp.float32)
        acc = acc + jnp.dot(s_mid, wb_ref[1],
                            preferred_element_type=jnp.float32)
        acc = acc + jnp.dot(s_dn, wb_ref[2],
                            preferred_element_type=jnp.float32)
        return acc                       # (NH, WC) f32

    def channel_sum(v):
        # (NH, WC) -> (1, WC) where EVERY lane already holds its full
        # per-channel sum (lane-broadcast form): sublane reduce, then a
        # log2(W)-step roll-add tree along lanes (XLU slot).  No
        # lane<->sublane reshapes and no later broadcast needed.
        col = jnp.sum(v, axis=0, keepdims=True)              # (1, WC)
        shift = C
        while shift < WC:
            col = col + pltpu.roll(col, shift=shift, axis=1)
            shift *= 2
        return col

    def batch_norm(v, gamma, beta):
        # Two-pass batch statistics in f32 (mean, then E[(x-mean)^2]) to avoid
        # E[x^2]-E[x]^2 cancellation.  gamma/beta/mean/scale are all
        # lane-dense (1, WC) rows -> pure VPU broadcasts.
        mean = channel_sum(v) * inv_nhw
        d = v - mean
        var = channel_sum(d * d) * inv_nhw
        scale = gamma * jax.lax.rsqrt(var + EPS)
        return d * scale + beta

    x = x_ref[...]                                           # (NH, WC) f32
    g1 = g1_ref[...]
    b1 = be1_ref[...]
    g2 = g2_ref[...]
    b2 = be2_ref[...]

    y1 = jnp.maximum(batch_norm(conv3x3(x, w1b_ref), g1, b1), 0.0)
    y2 = batch_norm(conv3x3(y1, w2b_ref), g2, b2)
    out_ref[...] = jnp.maximum(y2 + x, 0.0).astype(out_ref.dtype)


def _banded_weights(w_oihw, W):
    """Fold the dx taps and W zero-padding of a 3x3 conv into 3 banded
    (W*Cin, W*Cout) matrices (one per kernel row dy), cast to bf16.

    B[dy, w_in*Cin+ci, w_out*Cout+co] = weight[co, ci, dy, w_in - w_out + 1]
    when |w_in - w_out| <= 1, else 0.

    TODO(synk): at real ResNet sizes (e.g. W=56, C=64) these banded matrices
    exceed v7x's 64 MiB VMEM and waste ~W/3 of MXU cycles on structural zeros;
    switch to 9 per-tap (Cin, Cout) matmuls with a lane-axis roll for dx.
    """
    Cout, Cin, KH, KW = w_oihw.shape
    assert KH == 3 and KW == 3
    w_hwio = jnp.transpose(w_oihw, (2, 3, 1, 0)).astype(jnp.float32)  # (3,3,Ci,Co)
    win = jnp.arange(W).reshape(1, W, 1)
    wout = jnp.arange(W).reshape(1, 1, W)
    dx = jnp.arange(KW).reshape(KW, 1, 1)
    sel = (win == wout + dx - 1).astype(jnp.float32)                  # (3, W, W)
    band = jnp.einsum('dnm,kdio->knimo', sel, w_hwio)                 # (3,W,Ci,W,Co)
    return band.reshape(KH, W * Cin, W * Cout).astype(jnp.bfloat16)


def _lane_param(p, W):
    """Per-channel (C,) param -> lane-dense (1, W*C) row, lane order (w, c)."""
    return jnp.tile(p.astype(jnp.float32), (W,)).reshape(1, -1)


def basic_block_slab(x2d, w1b, w2b, g1l, b1l, g2l, b2l, *, img_h, channels):
    """BasicBlock on the lane-dense (N*H, W*C) activation slab.

    Chains of BasicBlocks should call this directly so activations stay in the
    slab layout between blocks (no NCHW<->NHWC relayout per block).
    """
    NH, WC = x2d.shape

    operand_bytes = (2 * x2d.size * 4              # x slab + out slab (f32)
                     + (w1b.size + w2b.size) * 2   # banded weights (bf16)
                     + 4 * WC * 4)                 # 4 lane-dense BN params
    vmem_limit = max(4 * 1024 * 1024, 4 * operand_bytes)

    kernel = functools.partial(_basic_block_kernel, img_h=img_h,
                               channels=channels)

    # TODO(synk): real ResNet sizes need (a) the per-tap (Cin,Cout) conv
    # formulation instead of banded (W*C, W*C) weights, and (b) a row-tiled
    # grid with 'parallel' semantics plus a cross-tile partial-sum BN
    # reduction (or folded inference BN) to use both v7x TensorCores.  At this
    # toy shape a single gridless invocation is fixed-overhead bound.
    return pl.pallas_call(
        kernel,
        out_shape=jax.ShapeDtypeStruct((NH, WC), jnp.float32),
        in_specs=[pl.BlockSpec(memory_space=pltpu.MemorySpace.VMEM)] * 7,
        out_specs=pl.BlockSpec(memory_space=pltpu.MemorySpace.VMEM),
        compiler_params=pltpu.CompilerParams(vmem_limit_bytes=vmem_limit),
    )(x2d, w1b, w2b, g1l, b1l, g2l, b2l)


def basic_block(x_nchw, w1_oihw, w2_oihw, g1, b1, g2, b2):
    """BasicBlock forward, NCHW in / NCHW out (PyTorch convention).

    The NCHW<->slab transposes here are one-time layout plumbing for the
    PyTorch-style interface; when stacking blocks, stay in slab layout and use
    basic_block_slab directly.
    """
    x = jnp.transpose(x_nchw, (0, 2, 3, 1)).astype(jnp.float32)       # NHWC
    N, H, W, C = x.shape
    assert w1_oihw.shape[0] == C, "identity residual needs inplanes == planes"
    assert (W * C) % 128 == 0, "lane-dense slab needs W*C multiple of 128"
    assert W & (W - 1) == 0, "lane roll-add reduction needs power-of-two W"

    x2d = x.reshape(N * H, W * C)                # lane-dense activation slab
    w1b = _banded_weights(w1_oihw, W)            # (3, W*C, W*C) bf16
    w2b = _banded_weights(w2_oihw, W)

    out2d = basic_block_slab(
        x2d, w1b, w2b,
        _lane_param(g1, W), _lane_param(b1, W),
        _lane_param(g2, W), _lane_param(b2, W),
        img_h=H, channels=C)

    return jnp.transpose(out2d.reshape(N, H, W, C), (0, 3, 1, 2))     # -> NCHW


def basic_block_reference(x, w1, w2, g1, b1, g2, b2):
    """Pure-JAX f32 reference (NCHW, OIHW) mirroring PyTorch BasicBlock.forward."""
    def conv(a, w):
        return jax.lax.conv_general_dilated(
            a, w, window_strides=(1, 1), padding=((1, 1), (1, 1)),
            dimension_numbers=("NCHW", "OIHW", "NCHW"),
            precision=jax.lax.Precision.HIGHEST)

    def bn(a, g, b):
        mean = jnp.mean(a, axis=(0, 2, 3), keepdims=True)
        var = jnp.mean((a - mean) ** 2, axis=(0, 2, 3), keepdims=True)
        return ((a - mean) * jax.lax.rsqrt(var + EPS)
                * g[None, :, None, None] + b[None, :, None, None])

    out = jax.nn.relu(bn(conv(x, w1), g1, b1))
    out = bn(conv(out, w2), g2, b2)
    return jax.nn.relu(out + x)


if __name__ == "__main__":
    N, C, H, W = 2, 8, 16, 16   # W*C = 128 -> exactly lane-dense slabs

    key = jax.random.PRNGKey(0)
    kx, kw1, kw2, kg1, kb1, kg2, kb2 = jax.random.split(key, 7)

    x = jax.random.normal(kx, (N, C, H, W), jnp.float32)
    w1 = jax.random.normal(kw1, (C, C, 3, 3), jnp.float32) * 0.1   # conv1 (OIHW)
    w2 = jax.random.normal(kw2, (C, C, 3, 3), jnp.float32) * 0.1   # conv2 (OIHW)
    g1 = 1.0 + 0.1 * jax.random.normal(kg1, (C,), jnp.float32)     # bn1 gamma
    b1 = 0.1 * jax.random.normal(kb1, (C,), jnp.float32)           # bn1 beta
    g2 = 1.0 + 0.1 * jax.random.normal(kg2, (C,), jnp.float32)     # bn2 gamma
    b2 = 0.1 * jax.random.normal(kb2, (C,), jnp.float32)           # bn2 beta

    out = basic_block(x, w1, w2, g1, b1, g2, b2)
    out = jax.block_until_ready(out)

    ref = basic_block_reference(x, w1, w2, g1, b1, g2, b2)
    assert out.shape == (N, C, H, W)
    err = float(jnp.max(jnp.abs(out - ref)))
    # Kernel uses bf16 MXU operands (f32 accumulation) across two convs; the
    # reference is full f32, so allow a few e-2 of absolute error.
    assert err < 5e-2, f"kernel output mismatch vs f32 reference: {err}"

    print("KERNEL_OK")
</pallas_src>

<mosaic_0001>
module attributes {stable_mosaic.version = 11 : i64} {
  func.func @_basic_block_kernel(%arg0: memref<32x128xf32, #tpu.memory_space<vmem>>, %arg1: memref<3x128x128xbf16, #tpu.memory_space<vmem>>, %arg2: memref<3x128x128xbf16, #tpu.memory_space<vmem>>, %arg3: memref<1x128xf32, #tpu.memory_space<vmem>>, %arg4: memref<1x128xf32, #tpu.memory_space<vmem>>, %arg5: memref<1x128xf32, #tpu.memory_space<vmem>>, %arg6: memref<1x128xf32, #tpu.memory_space<vmem>>, %arg7: memref<32x128xf32, #tpu.memory_space<vmem>>) attributes {dimension_semantics = [], scalar_prefetch = 0 : i64, scratch_operands = 0 : i64, tpu.core_type = #tpu.core_type<tc>} {
    %0 = tpu.iota {dimensions = array<i32: 0>} : vector<32x1xi32>
    %c16_i32 = arith.constant 16 : i32
    %c0_i32 = arith.constant 0 : i32
    %1 = arith.cmpi eq, %c16_i32, %c0_i32 : i32
    %c1_i32 = arith.constant 1 : i32
    %2 = arith.select %1, %c1_i32, %c16_i32 : i32
    %3 = vector.broadcast %2 : i32 to vector<32x1xi32>
    %4 = arith.remsi %0, %3 : vector<32x1xi32>
    %c0_i32_0 = arith.constant 0 : i32
    %5 = vector.broadcast %c0_i32_0 : i32 to vector<32x1xi32>
    %6 = arith.cmpi ne, %4, %5 : vector<32x1xi32>
    %c0_i32_1 = arith.constant 0 : i32
    %7 = vector.broadcast %c0_i32_1 : i32 to vector<32x1xi32>
    %8 = arith.cmpi slt, %4, %7 : vector<32x1xi32>
    %c0_i32_2 = arith.constant 0 : i32
    %9 = arith.cmpi slt, %2, %c0_i32_2 : i32
    %10 = vector.broadcast %9 : i1 to vector<32x1xi1>
    %11 = vector.broadcast %10 : vector<32x1xi1> to vector<32x1xi1>
    %12 = arith.xori %8, %11 : vector<32x1xi1>
    %13 = arith.andi %12, %6 : vector<32x1xi1>
    %14 = vector.broadcast %2 : i32 to vector<32x1xi32>
    %15 = arith.addi %4, %14 : vector<32x1xi32>
    %16 = arith.select %13, %15, %4 : vector<32x1xi1>, vector<32x1xi32>
    %c0 = arith.constant 0 : index
    %c0_3 = arith.constant 0 : index
    %17 = vector.load %arg0[%c0, %c0_3] : memref<32x128xf32, #tpu.memory_space<vmem>>, vector<32x128xf32>
    %c0_4 = arith.constant 0 : index
    %c0_5 = arith.constant 0 : index
    %18 = vector.load %arg3[%c0_4, %c0_5] : memref<1x128xf32, #tpu.memory_space<vmem>>, vector<1x128xf32>
    %c0_6 = arith.constant 0 : index
    %c0_7 = arith.constant 0 : index
    %19 = vector.load %arg4[%c0_6, %c0_7] : memref<1x128xf32, #tpu.memory_space<vmem>>, vector<1x128xf32>
    %c0_8 = arith.constant 0 : index
    %c0_9 = arith.constant 0 : index
    %20 = vector.load %arg5[%c0_8, %c0_9] : memref<1x128xf32, #tpu.memory_space<vmem>>, vector<1x128xf32>
    %c0_10 = arith.constant 0 : index
    %c0_11 = arith.constant 0 : index
    %21 = vector.load %arg6[%c0_10, %c0_11] : memref<1x128xf32, #tpu.memory_space<vmem>>, vector<1x128xf32>
    %c0_i32_12 = arith.constant 0 : i32
    %22 = vector.broadcast %c0_i32_12 : i32 to vector<32x1xi32>
    %23 = arith.cmpi eq, %16, %22 : vector<32x1xi32>
    %c1_i32_13 = arith.constant 1 : i32
    %24 = tpu.dynamic_rotate %17 by %c1_i32_13 dim 0 : vector<32x128xf32>, i32 -> vector<32x128xf32>
    %cst = arith.constant 0.000000e+00 : f32
    %25 = vector.shape_cast %23 : vector<32x1xi1> to vector<32x1xi1>
    %26 = vector.broadcast %25 : vector<32x1xi1> to vector<32x128xi1>
    %27 = vector.broadcast %cst : f32 to vector<32x128xf32>
    %28 = arith.select %26, %27, %24 : vector<32x128xi1>, vector<32x128xf32>
    %c15_i32 = arith.constant 15 : i32
    %29 = vector.broadcast %c15_i32 : i32 to vector<32x1xi32>
    %30 = arith.cmpi eq, %16, %29 : vector<32x1xi32>
    %c31_i32 = arith.constant 31 : i32
    %31 = tpu.dynamic_rotate %17 by %c31_i32 dim 0 : vector<32x128xf32>, i32 -> vector<32x128xf32>
    %cst_14 = arith.constant 0.000000e+00 : f32
    %32 = vector.shape_cast %30 : vector<32x1xi1> to vector<32x1xi1>
    %33 = vector.broadcast %32 : vector<32x1xi1> to vector<32x128xi1>
    %34 = vector.broadcast %cst_14 : f32 to vector<32x128xf32>
    %35 = arith.select %33, %34, %31 : vector<32x128xi1>, vector<32x128xf32>
    %36 = arith.truncf %28 : vector<32x128xf32> to vector<32x128xbf16>
    %37 = arith.truncf %17 : vector<32x128xf32> to vector<32x128xbf16>
    %38 = arith.truncf %35 : vector<32x128xf32> to vector<32x128xbf16>
    %c0_15 = arith.constant 0 : index
    %c0_16 = arith.constant 0 : index
    %c0_17 = arith.constant 0 : index
    %39 = vector.load %arg1[%c0_15, %c0_16, %c0_17] : memref<3x128x128xbf16, #tpu.memory_space<vmem>>, vector<1x128x128xbf16>
    %40 = vector.shape_cast %39 : vector<1x128x128xbf16> to vector<128x128xbf16>
    %cst_18 = arith.constant dense<0.000000e+00> : vector<32x128xf32>
    %41 = tpu.matmul %36, %40, %cst_18 {dimension_numbers = #tpu.dot_dimension_numbers<[1], [0], [0], [1], [0, 0, 1, 1], [], []>} : vector<32x128xbf16>, vector<128x128xbf16>, vector<32x128xf32> -> vector<32x128xf32>
    %c1 = arith.constant 1 : index
    %c0_19 = arith.constant 0 : index
    %c0_20 = arith.constant 0 : index
    %42 = vector.load %arg1[%c1, %c0_19, %c0_20] : memref<3x128x128xbf16, #tpu.memory_space<vmem>>, vector<1x128x128xbf16>
    %43 = vector.shape_cast %42 : vector<1x128x128xbf16> to vector<128x128xbf16>
    %cst_21 = arith.constant dense<0.000000e+00> : vector<32x128xf32>
    %44 = tpu.matmul %37, %43, %cst_21 {dimension_numbers = #tpu.dot_dimension_numbers<[1], [0], [0], [1], [0, 0, 1, 1], [], []>} : vector<32x128xbf16>, vector<128x128xbf16>, vector<32x128xf32> -> vector<32x128xf32>
    %45 = arith.addf %41, %44 : vector<32x128xf32>
    %c2 = arith.constant 2 : index
    %c0_22 = arith.constant 0 : index
    %c0_23 = arith.constant 0 : index
    %46 = vector.load %arg1[%c2, %c0_22, %c0_23] : memref<3x128x128xbf16, #tpu.memory_space<vmem>>, vector<1x128x128xbf16>
    %47 = vector.shape_cast %46 : vector<1x128x128xbf16> to vector<128x128xbf16>
    %cst_24 = arith.constant dense<0.000000e+00> : vector<32x128xf32>
    %48 = tpu.matmul %38, %47, %cst_24 {dimension_numbers = #tpu.dot_dimension_numbers<[1], [0], [0], [1], [0, 0, 1, 1], [], []>} : vector<32x128xbf16>, vector<128x128xbf16>, vector<32x128xf32> -> vector<32x128xf32>
    %49 = arith.addf %45, %48 : vector<32x128xf32>
    %cst_25 = arith.constant dense<0.000000e+00> : vector<128xf32>
    %50 = vector.multi_reduction <add>, %49, %cst_25 [0] : vector<32x128xf32> to vector<128xf32>
    %51 = vector.shape_cast %50 : vector<128xf32> to vector<1x128xf32>
    %c8_i32 = arith.constant 8 : i32
    %52 = tpu.dynamic_rotate %51 by %c8_i32 dim 1 : vector<1x128xf32>, i32 -> vector<1x128xf32>
    %53 = arith.addf %51, %52 : vector<1x128xf32>
    %c16_i32_26 = arith.constant 16 : i32
    %54 = tpu.dynamic_rotate %53 by %c16_i32_26 dim 1 : vector<1x128xf32>, i32 -> vector<1x128xf32>
    %55 = arith.addf %53, %54 : vector<1x128xf32>
    %c32_i32 = arith.constant 32 : i32
    %56 = tpu.dynamic_rotate %55 by %c32_i32 dim 1 : vector<1x128xf32>, i32 -> vector<1x128xf32>
    %57 = arith.addf %55, %56 : vector<1x128xf32>
    %c64_i32 = arith.constant 64 : i32
    %58 = tpu.dynamic_rotate %57 by %c64_i32 dim 1 : vector<1x128xf32>, i32 -> vector<1x128xf32>
    %59 = arith.addf %57, %58 : vector<1x128xf32>
    %cst_27 = arith.constant 0.001953125 : f32
    %60 = vector.broadcast %cst_27 : f32 to vector<1x128xf32>
    %61 = arith.mulf %59, %60 : vector<1x128xf32>
    %62 = vector.broadcast %61 : vector<1x128xf32> to vector<32x128xf32>
    %63 = arith.subf %49, %62 : vector<32x128xf32>
    %64 = arith.mulf %63, %63 : vector<32x128xf32>
    %cst_28 = arith.constant dense<0.000000e+00> : vector<128xf32>
    %65 = vector.multi_reduction <add>, %64, %cst_28 [0] : vector<32x128xf32> to vector<128xf32>
    %66 = vector.shape_cast %65 : vector<128xf32> to vector<1x128xf32>
    %c8_i32_29 = arith.constant 8 : i32
    %67 = tpu.dynamic_rotate %66 by %c8_i32_29 dim 1 : vector<1x128xf32>, i32 -> vector<1x128xf32>
    %68 = arith.addf %66, %67 : vector<1x128xf32>
    %c16_i32_30 = arith.constant 16 : i32
    %69 = tpu.dynamic_rotate %68 by %c16_i32_30 dim 1 : vector<1x128xf32>, i32 -> vector<1x128xf32>
    %70 = arith.addf %68, %69 : vector<1x128xf32>
    %c32_i32_31 = arith.constant 32 : i32
    %71 = tpu.dynamic_rotate %70 by %c32_i32_31 dim 1 : vector<1x128xf32>, i32 -> vector<1x128xf32>
    %72 = arith.addf %70, %71 : vector<1x128xf32>
    %c64_i32_32 = arith.constant 64 : i32
    %73 = tpu.dynamic_rotate %72 by %c64_i32_32 dim 1 : vector<1x128xf32>, i32 -> vector<1x128xf32>
    %74 = arith.addf %72, %73 : vector<1x128xf32>
    %cst_33 = arith.constant 0.001953125 : f32
    %75 = vector.broadcast %cst_33 : f32 to vector<1x128xf32>
    %76 = arith.mulf %74, %75 : vector<1x128xf32>
    %cst_34 = arith.constant 9.99999974E-6 : f32
    %77 = vector.broadcast %cst_34 : f32 to vector<1x128xf32>
    %78 = arith.addf %76, %77 : vector<1x128xf32>
    %79 = math.rsqrt %78 : vector<1x128xf32>
    %80 = arith.mulf %18, %79 : vector<1x128xf32>
    %81 = vector.broadcast %80 : vector<1x128xf32> to vector<32x128xf32>
    %82 = arith.mulf %63, %81 : vector<32x128xf32>
    %83 = vector.broadcast %19 : vector<1x128xf32> to vector<32x128xf32>
    %84 = arith.addf %82, %83 : vector<32x128xf32>
    %cst_35 = arith.constant 0.000000e+00 : f32
    %85 = vector.broadcast %cst_35 : f32 to vector<32x128xf32>
    %86 = arith.maximumf %84, %85 : vector<32x128xf32>
    %c0_i32_36 = arith.constant 0 : i32
    %87 = vector.broadcast %c0_i32_36 : i32 to vector<32x1xi32>
    %88 = arith.cmpi eq, %16, %87 : vector<32x1xi32>
    %c1_i32_37 = arith.constant 1 : i32
    %89 = tpu.dynamic_rotate %86 by %c1_i32_37 dim 0 : vector<32x128xf32>, i32 -> vector<32x128xf32>
    %cst_38 = arith.constant 0.000000e+00 : f32
    %90 = vector.shape_cast %88 : vector<32x1xi1> to vector<32x1xi1>
    %91 = vector.broadcast %90 : vector<32x1xi1> to vector<32x128xi1>
    %92 = vector.broadcast %cst_38 : f32 to vector<32x128xf32>
    %93 = arith.select %91, %92, %89 : vector<32x128xi1>, vector<32x128xf32>
    %c15_i32_39 = arith.constant 15 : i32
    %94 = vector.broadcast %c15_i32_39 : i32 to vector<32x1xi32>
    %95 = arith.cmpi eq, %16, %94 : vector<32x1xi32>
    %c31_i32_40 = arith.constant 31 : i32
    %96 = tpu.dynamic_rotate %86 by %c31_i32_40 dim 0 : vector<32x128xf32>, i32 -> vector<32x128xf32>
    %cst_41 = arith.constant 0.000000e+00 : f32
    %97 = vector.shape_cast %95 : vector<32x1xi1> to vector<32x1xi1>
    %98 = vector.broadcast %97 : vector<32x1xi1> to vector<32x128xi1>
    %99 = vector.broadcast %cst_41 : f32 to vector<32x128xf32>
    %100 = arith.select %98, %99, %96 : vector<32x128xi1>, vector<32x128xf32>
    %101 = arith.truncf %93 : vector<32x128xf32> to vector<32x128xbf16>
    %102 = arith.truncf %86 : vector<32x128xf32> to vector<32x128xbf16>
    %103 = arith.truncf %100 : vector<32x128xf32> to vector<32x128xbf16>
    %c0_42 = arith.constant 0 : index
    %c0_43 = arith.constant 0 : index
    %c0_44 = arith.constant 0 : index
    %104 = vector.load %arg2[%c0_42, %c0_43, %c0_44] : memref<3x128x128xbf16, #tpu.memory_space<vmem>>, vector<1x128x128xbf16>
    %105 = vector.shape_cast %104 : vector<1x128x128xbf16> to vector<128x128xbf16>
    %cst_45 = arith.constant dense<0.000000e+00> : vector<32x128xf32>
    %106 = tpu.matmul %101, %105, %cst_45 {dimension_numbers = #tpu.dot_dimension_numbers<[1], [0], [0], [1], [0, 0, 1, 1], [], []>} : vector<32x128xbf16>, vector<128x128xbf16>, vector<32x128xf32> -> vector<32x128xf32>
    %c1_46 = arith.constant 1 : index
    %c0_47 = arith.constant 0 : index
    %c0_48 = arith.constant 0 : index
    %107 = vector.load %arg2[%c1_46, %c0_47, %c0_48] : memref<3x128x128xbf16, #tpu.memory_space<vmem>>, vector<1x128x128xbf16>
    %108 = vector.shape_cast %107 : vector<1x128x128xbf16> to vector<128x128xbf16>
    %cst_49 = arith.constant dense<0.000000e+00> : vector<32x128xf32>
    %109 = tpu.matmul %102, %108, %cst_49 {dimension_numbers = #tpu.dot_dimension_numbers<[1], [0], [0], [1], [0, 0, 1, 1], [], []>} : vector<32x128xbf16>, vector<128x128xbf16>, vector<32x128xf32> -> vector<32x128xf32>
    %110 = arith.addf %106, %109 : vector<32x128xf32>
    %c2_50 = arith.constant 2 : index
    %c0_51 = arith.constant 0 : index
    %c0_52 = arith.constant 0 : index
    %111 = vector.load %arg2[%c2_50, %c0_51, %c0_52] : memref<3x128x128xbf16, #tpu.memory_space<vmem>>, vector<1x128x128xbf16>
    %112 = vector.shape_cast %111 : vector<1x128x128xbf16> to vector<128x128xbf16>
    %cst_53 = arith.constant dense<0.000000e+00> : vector<32x128xf32>
    %113 = tpu.matmul %103, %112, %cst_53 {dimension_numbers = #tpu.dot_dimension_numbers<[1], [0], [0], [1], [0, 0, 1, 1], [], []>} : vector<32x128xbf16>, vector<128x128xbf16>, vector<32x128xf32> -> vector<32x128xf32>
    %114 = arith.addf %110, %113 : vector<32x128xf32>
    %cst_54 = arith.constant dense<0.000000e+00> : vector<128xf32>
    %115 = vector.multi_reduction <add>, %114, %cst_54 [0] : vector<32x128xf32> to vector<128xf32>
    %116 = vector.shape_cast %115 : vector<128xf32> to vector<1x128xf32>
    %c8_i32_55 = arith.constant 8 : i32
    %117 = tpu.dynamic_rotate %116 by %c8_i32_55 dim 1 : vector<1x128xf32>, i32 -> vector<1x128xf32>
    %118 = arith.addf %116, %117 : vector<1x128xf32>
    %c16_i32_56 = arith.constant 16 : i32
    %119 = tpu.dynamic_rotate %118 by %c16_i32_56 dim 1 : vector<1x128xf32>, i32 -> vector<1x128xf32>
    %120 = arith.addf %118, %119 : vector<1x128xf32>
    %c32_i32_57 = arith.constant 32 : i32
    %121 = tpu.dynamic_rotate %120 by %c32_i32_57 dim 1 : vector<1x128xf32>, i32 -> vector<1x128xf32>
    %122 = arith.addf %120, %121 : vector<1x128xf32>
    %c64_i32_58 = arith.constant 64 : i32
    %123 = tpu.dynamic_rotate %122 by %c64_i32_58 dim 1 : vector<1x128xf32>, i32 -> vector<1x128xf32>
    %124 = arith.addf %122, %123 : vector<1x128xf32>
    %cst_59 = arith.constant 0.001953125 : f32
    %125 = vector.broadcast %cst_59 : f32 to vector<1x128xf32>
    %126 = arith.mulf %124, %125 : vector<1x128xf32>
    %127 = vector.broadcast %126 : vector<1x128xf32> to vector<32x128xf32>
    %128 = arith.subf %114, %127 : vector<32x128xf32>
    %129 = arith.mulf %128, %128 : vector<32x128xf32>
    %cst_60 = arith.constant dense<0.000000e+00> : vector<128xf32>
    %130 = vector.multi_reduction <add>, %129, %cst_60 [0] : vector<32x128xf32> to vector<128xf32>
    %131 = vector.shape_cast %130 : vector<128xf32> to vector<1x128xf32>
    %c8_i32_61 = arith.constant 8 : i32
    %132 = tpu.dynamic_rotate %131 by %c8_i32_61 dim 1 : vector<1x128xf32>, i32 -> vector<1x128xf32>
    %133 = arith.addf %131, %132 : vector<1x128xf32>
    %c16_i32_62 = arith.constant 16 : i32
    %134 = tpu.dynamic_rotate %133 by %c16_i32_62 dim 1 : vector<1x128xf32>, i32 -> vector<1x128xf32>
    %135 = arith.addf %133, %134 : vector<1x128xf32>
    %c32_i32_63 = arith.constant 32 : i32
    %136 = tpu.dynamic_rotate %135 by %c32_i32_63 dim 1 : vector<1x128xf32>, i32 -> vector<1x128xf32>
    %137 = arith.addf %135, %136 : vector<1x128xf32>
    %c64_i32_64 = arith.constant 64 : i32
    %138 = tpu.dynamic_rotate %137 by %c64_i32_64 dim 1 : vector<1x128xf32>, i32 -> vector<1x128xf32>
    %139 = arith.addf %137, %138 : vector<1x128xf32>
    %cst_65 = arith.constant 0.001953125 : f32
    %140 = vector.broadcast %cst_65 : f32 to vector<1x128xf32>
    %141 = arith.mulf %139, %140 : vector<1x128xf32>
    %cst_66 = arith.constant 9.99999974E-6 : f32
    %142 = vector.broadcast %cst_66 : f32 to vector<1x128xf32>
    %143 = arith.addf %141, %142 : vector<1x128xf32>
    %144 = math.rsqrt %143 : vector<1x128xf32>
    %145 = arith.mulf %20, %144 : vector<1x128xf32>
    %146 = vector.broadcast %145 : vector<1x128xf32> to vector<32x128xf32>
    %147 = arith.mulf %128, %146 : vector<32x128xf32>
    %148 = vector.broadcast %21 : vector<1x128xf32> to vector<32x128xf32>
    %149 = arith.addf %147, %148 : vector<32x128xf32>
    %150 = arith.addf %149, %17 : vector<32x128xf32>
    %cst_67 = arith.constant 0.000000e+00 : f32
    %151 = vector.broadcast %cst_67 : f32 to vector<32x128xf32>
    %152 = arith.maximumf %150, %151 : vector<32x128xf32>
    %c0_68 = arith.constant 0 : index
    %c0_69 = arith.constant 0 : index
    %153 = vector.load %arg7[%c0_68, %c0_69] : memref<32x128xf32, #tpu.memory_space<vmem>>, vector<32x128xf32>
    tpu.vector_store %arg7[%c0_68, %c0_69], %152 {strides = array<i32>} : memref<32x128xf32, #tpu.memory_space<vmem>>, vector<32x128xf32>,
    return
  }
}

</mosaic_0001>

<llo_original>
// kernel: tpu_custom_call.1
$region0: #{tpu_custom_call.1}
  #allocation0 [shape = 'u32[]', space=smem, size = 0x4, offset = 0x4, fixed_abs, tag = 'smem constant byte address 0x4 - core index']
  #allocation1 [shape = 'u32[144,128]{1,0:T(1,128)}', space=vmem, size = 0x12000, scoped, tag = 'internal scratch']
  %s0 = inlined_call_operand.hbm [shape: f32[32,128], index: 0, kind: input, shape index: {}]
  %s1 = inlined_call_operand.hbm [shape: bf16[3,128,128], index: 1, kind: input, shape index: {}]
  %s2 = inlined_call_operand.hbm [shape: bf16[3,128,128], index: 2, kind: input, shape index: {}]
  %s3 = inlined_call_operand.vmem [shape: f32[1,128], index: 3, kind: input, shape index: {}]
  %s4 = inlined_call_operand.vmem [shape: f32[1,128], index: 4, kind: input, shape index: {}]
  %s5 = inlined_call_operand.vmem [shape: f32[1,128], index: 5, kind: input, shape index: {}]
  %s6 = inlined_call_operand.vmem [shape: f32[1,128], index: 6, kind: input, shape index: {}]
  %s7 = inlined_call_operand.hbm [shape: f32[32,128], index: 7, kind: output, shape index: {}]
  %s8 = sld [smem:[#allocation0]]
  $region50: #{tpu_custom_call.1} parent=0
    _
  %s10 = ssub.s32 1, %s8
  %s11 = scalar_select 0, %s10, %s8
  $region1: #{tpu_custom_call.1} parent=0
    #allocation2 [shape = 'u8[16384]{0}', space=vmem, size = 0x4000, scoped, tag = 'input window, operand 0, single buffered']
    #allocation3 [shape = 's32[1]{0}', space=sflag, size = 0x4, scoped, tag = 'scoped memory for tpu_custom_call.1']
    #allocation4 [shape = 's32[1]{0}', space=sflag, size = 0x4, scoped, tag = 'scoped memory for tpu_custom_call.1']
    #allocation5 [shape = 'u8[98304]{0}', space=vmem, size = 0x18000, scoped, tag = 'input window, operand 1, single buffered']
    #allocation6 [shape = 's32[1]{0}', space=sflag, size = 0x4, scoped, tag = 'scoped memory for tpu_custom_call.1']
    #allocation7 [shape = 'u8[98304]{0}', space=vmem, size = 0x18000, scoped, tag = 'input window, operand 2, single buffered']
    #allocation8 [shape = 'u8[16384]{0}', space=vmem, size = 0x4000, scoped, tag = 'output window, operand 0, single buffered']
    %12 = vsyncpa [#allocation3], 0
    %13 = vsyncpa [#allocation6], 0
    %14 = vsyncpa [#allocation4], 0
    // Predicated region
    $region2: #{tpu_custom_call.1} parent=1 // pred_check
      _
    $region3: #{tpu_custom_call.1} parent=1 // pred_check_branch
      %16 = sbr.rel (0) target = $region5
    $region4: #{tpu_custom_call.1} parent=1 // pred_region
      %s18 = ssub.s32 512, 512
      %19 = vsyncadd [#allocation3], %s18
      %s20 = sshll.u32 [#allocation2], 4
      %s21 = int_to_ptr.vmem [resolvable:$true] %s20
      %26 = dma.hbm_to_vmem [thread:$0]  %s0, 512, %s21, [#allocation3], 128, 128, 8
    $region5: #{tpu_custom_call.1} parent=1 // pred_fallthru
      _
    // Predicated region
    $region6: #{tpu_custom_call.1} parent=1 // pred_check
      _
    $region7: #{tpu_custom_call.1} parent=1 // pred_check_branch
      %28 = sbr.rel (0) target = $region9
    $region8: #{tpu_custom_call.1} parent=1 // pred_region
      %s30 = ssub.s32 3072, 3072
      %31 = vsyncadd [#allocation6], %s30
      %s32 = sshll.u32 [#allocation5], 4
      %s33 = int_to_ptr.vmem [resolvable:$true] %s32
      %38 = dma.hbm_to_vmem [thread:$0]  %s1, 3072, %s33, [#allocation6], 64, 64, 4
    $region9: #{tpu_custom_call.1} parent=1 // pred_fallthru
      _
    // Predicated region
    $region10: #{tpu_custom_call.1} parent=1 // pred_check
      _
    $region11: #{tpu_custom_call.1} parent=1 // pred_check_branch
      %40 = sbr.rel (0) target = $region13
    $region12: #{tpu_custom_call.1} parent=1 // pred_region
      %s42 = ssub.s32 3072, 3072
      %43 = vsyncadd [#allocation6], %s42
      %s44 = sshll.u32 [#allocation7], 4
      %s45 = int_to_ptr.vmem [resolvable:$true] %s44
      %50 = dma.hbm_to_vmem [thread:$0]  %s2, 3072, %s45, [#allocation6], 64, 64, 4
    $region13: #{tpu_custom_call.1} parent=1 // pred_fallthru
      _
    // Predicated region
    $region14: #{tpu_custom_call.1} parent=1 // pred_check
      _
    $region15: #{tpu_custom_call.1} parent=1 // pred_check_branch
      %52 = sbr.rel (0) target = $region17
    $region16: #{tpu_custom_call.1} parent=1 // pred_region
      _
    $region17: #{tpu_custom_call.1} parent=1 // pred_fallthru
      _
    // Predicated region
    $region18: #{tpu_custom_call.1} parent=1 // pred_check
      _
    $region19: #{tpu_custom_call.1} parent=1 // pred_check_branch
      %54 = sbr.rel (0) target = $region21
    $region20: #{tpu_custom_call.1} parent=1 // pred_region
      _
    $region21: #{tpu_custom_call.1} parent=1 // pred_fallthru
      _
    // Predicated region
    $region22: #{tpu_custom_call.1} parent=1 // pred_check
      _
    $region23: #{tpu_custom_call.1} parent=1 // pred_check_branch
      %56 = sbr.rel (0) target = $region25
    $region24: #{tpu_custom_call.1} parent=1 // pred_region
      _
    $region25: #{tpu_custom_call.1} parent=1 // pred_fallthru
      _
    // Predicated region
    $region26: #{tpu_custom_call.1} parent=1 // pred_check
      _
    $region27: #{tpu_custom_call.1} parent=1 // pred_check_branch
      %58 = sbr.rel (0) target = $region29
    $region28: #{tpu_custom_call.1} parent=1 // pred_region
      _
    $region29: #{tpu_custom_call.1} parent=1 // pred_fallthru
      _
    // Predicated region
    $region30: #{tpu_custom_call.1} parent=1 // pred_check
      _
    $region31: #{tpu_custom_call.1} parent=1 // pred_check_branch
      %60 = sbr.rel (0) target = $region33
    $region32: #{tpu_custom_call.1} parent=1 // pred_region
      %61 = dma.done [#allocation3], 512
    $region33: #{tpu_custom_call.1} parent=1 // pred_fallthru
      _
    // Predicated region
    $region34: #{tpu_custom_call.1} parent=1 // pred_check
      _
    $region35: #{tpu_custom_call.1} parent=1 // pred_check_branch
      %63 = sbr.rel (0) target = $region37
    $region36: #{tpu_custom_call.1} parent=1 // pred_region
      %64 = dma.done [#allocation6], 3072
    $region37: #{tpu_custom_call.1} parent=1 // pred_fallthru
      _
    // Predicated region
    $region38: #{tpu_custom_call.1} parent=1 // pred_check
      _
    $region39: #{tpu_custom_call.1} parent=1 // pred_check_branch
      %66 = sbr.rel (0) target = $region41
    $region40: #{tpu_custom_call.1} parent=1 // pred_region
      %67 = dma.done [#allocation6], 3072
    $region41: #{tpu_custom_call.1} parent=1 // pred_fallthru
      _
    %v69 = vlaneseq
    %v70 = vshrl.u32 %v69, 7
    %v71 = vadd.s32 %v70, 8
    %v72 = vadd.s32 %v70, 16
    %v73 = vadd.s32 %v70, 24
    %vm74 = vcmp.lt.s32.totalorder %v70, 0
    %v75 = vsub.s32 0, %v70
    %v76 = vsel %vm74, %v75, %v70
    %v77 = vshrl.u32 %v76, 4
    %v78 = vand.u32 %v76, 15
    %v79 = vsub.s32 0, %v78
    %v80 = vsel %vm74, %v79, %v78
    %vm81 = vcmp.lt.s32.totalorder %v71, 0
    %v82 = vsub.s32 0, %v71
    %v83 = vsel %vm81, %v82, %v71
    %v84 = vshrl.u32 %v83, 4
    %v85 = vand.u32 %v83, 15
    %v86 = vsub.s32 0, %v85
    %v87 = vsel %vm81, %v86, %v85
    %vm88 = vcmp.lt.s32.totalorder %v72, 0
    %v89 = vsub.s32 0, %v72
    %v90 = vsel %vm88, %v89, %v72
    %v91 = vshrl.u32 %v90, 4
    %v92 = vand.u32 %v90, 15
    %v93 = vsub.s32 0, %v92
    %v94 = vsel %vm88, %v93, %v92
    %vm95 = vcmp.lt.s32.totalorder %v73, 0
    %v96 = vsub.s32 0, %v73
    %v97 = vsel %vm95, %v96, %v73
    %v98 = vshrl.u32 %v97, 4
    %v99 = vand.u32 %v97, 15
    %v100 = vsub.s32 0, %v99
    %v101 = vsel %vm95, %v100, %v99
    %vm102 = vcmp.ne.s32.totalorder %v80, 0
    %vm103 = vcmp.ne.s32.totalorder %v87, 0
    %vm104 = vcmp.ne.s32.totalorder %v94, 0
    %vm105 = vcmp.ne.s32.totalorder %v101, 0
    %vm106 = vcmp.lt.s32.totalorder %v80, 0
    %vm107 = vcmp.lt.s32.totalorder %v87, 0
    %vm108 = vcmp.lt.s32.totalorder %v94, 0
    %vm109 = vcmp.lt.s32.totalorder %v101, 0
    %vm110 = vmand %vm106, %vm102
    %vm111 = vmand %vm107, %vm103
    %vm112 = vmand %vm108, %vm104
    %vm113 = vmand %vm109, %vm105
    %v114 = vadd.s32 %v80, 16
    %v115 = vadd.s32 %v87, 16
    %v116 = vadd.s32 %v94, 16
    %v117 = vadd.s32 %v101, 16
    %v118 = vsel %vm110, %v114, %v80
    %v119 = vsel %vm111, %v115, %v87
    %v120 = vsel %vm112, %v116, %v94
    %v121 = vsel %vm113, %v117, %v101
    %v122 = vld [vmem:[#allocation2] sm:$0xff]
    %v123 = vld [vmem:[#allocation2 + $0x8] sm:$0xff]
    %v124 = vld [vmem:[#allocation2 + $0x10] sm:$0xff]
    %v125 = vld [vmem:[#allocation2 + $0x18] sm:$0xff]
    %v126 = vld [vmem:[%s3] sm:$0x1]
    %v127 = vld [vmem:[%s4] sm:$0x1]
    %v128 = vld [vmem:[%s5] sm:$0x1]
    %v129 = vld [vmem:[%s6] sm:$0x1]
    %vm130 = vcmp.eq.s32.totalorder %v118, 0
    %vm131 = vcmp.eq.s32.totalorder %v119, 0
    %vm132 = vcmp.eq.s32.totalorder %v120, 0
    %vm133 = vcmp.eq.s32.totalorder %v121, 0
    %v134 = vrot.slane %v122, 7
    %v135 = vrot.slane %v123, 7
    %v136 = vrot.slane %v124, 7
    %v137 = vrot.slane %v125, 7
    %vm138 = vcmp.lt.s32.totalorder %v70, 1
    %v139 = vsel %vm138, %v136, %v137
    %v140 = vsel %vm138, %v135, %v136
    %v141 = vsel %vm138, %v134, %v135
    %v142 = vsel %vm138, %v137, %v134
    %v143 = vsel %vm130, 1, 0
    %v144 = vsel %vm131, 1, 0
    %v145 = vsel %vm132, 1, 0
    %v146 = vsel %vm133, 1, 0
    %vm147 = vcmp.eq.s32.totalorder %v143, 1
    %vm148 = vcmp.eq.s32.totalorder %v144, 1
    %vm149 = vcmp.eq.s32.totalorder %v145, 1
    %vm150 = vcmp.eq.s32.totalorder %v146, 1
    %v151 = vsel %vm147, 0.0, %v142
    %v152 = vsel %vm148, 0.0, %v141
    %v153 = vsel %vm149, 0.0, %v140
    %v154 = vsel %vm150, 0.0, %v139
    %vm155 = vcmp.eq.s32.totalorder %v118, 15
    %vm156 = vcmp.eq.s32.totalorder %v119, 15
    %vm157 = vcmp.eq.s32.totalorder %v120, 15
    %vm158 = vcmp.eq.s32.totalorder %v121, 15
    %v159 = vrot.slane %v122, 1
    %v160 = vrot.slane %v123, 1
    %v161 = vrot.slane %v124, 1
    %v162 = vrot.slane %v125, 1
    %vm163 = vcmp.lt.s32.totalorder %v70, 7
    %v164 = vsel %vm163, %v161, %v162
    %v165 = vsel %vm163, %v160, %v161
    %v166 = vsel %vm163, %v159, %v160
    %v167 = vsel %vm163, %v162, %v159
    %v168 = vsel %vm155, 1, 0
    %v169 = vsel %vm156, 1, 0
    %v170 = vsel %vm157, 1, 0
    %v171 = vsel %vm158, 1, 0
    %vm172 = vcmp.eq.s32.totalorder %v168, 1
    %vm173 = vcmp.eq.s32.totalorder %v169, 1
    %vm174 = vcmp.eq.s32.totalorder %v170, 1
    %vm175 = vcmp.eq.s32.totalorder %v171, 1
    %v176 = vsel %vm172, 0.0, %v166
    %v177 = vsel %vm173, 0.0, %v165
    %v178 = vsel %vm174, 0.0, %v164
    %v179 = vsel %vm175, 0.0, %v167
    %v180 = vpack.c.bf16 %v152, %v151
    %v181 = vpack.c.bf16 %v154, %v153
    %v182 = vpack.c.bf16 %v123, %v122
    %v183 = vpack.c.bf16 %v125, %v124
    %v184 = vpack.c.bf16 %v177, %v176
    %v185 = vpack.c.bf16 %v179, %v178
    %v186 = vld [vmem:[#allocation5] sm:$0xf]
    %v187 = vld [vmem:[#allocation5 + $0x4] sm:$0xf]
    %v188 = vld [vmem:[#allocation5 + $0x8] sm:$0xf]
    %v189 = vld [vmem:[#allocation5 + $0xc] sm:$0xf]
    %v190 = vld [vmem:[#allocation5 + $0x10] sm:$0xf]
    %v191 = vld [vmem:[#allocation5 + $0x14] sm:$0xf]
    %v192 = vld [vmem:[#allocation5 + $0x18] sm:$0xf]
    %v193 = vld [vmem:[#allocation5 + $0x1c] sm:$0xf]
    %v194 = vld [vmem:[#allocation5 + $0x20] sm:$0xf]
    %v195 = vld [vmem:[#allocation5 + $0x24] sm:$0xf]
    %v196 = vld [vmem:[#allocation5 + $0x28] sm:$0xf]
    %v197 = vld [vmem:[#allocation5 + $0x2c] sm:$0xf]
    %v198 = vld [vmem:[#allocation5 + $0x30] sm:$0xf]
    %v199 = vld [vmem:[#allocation5 + $0x34] sm:$0xf]
    %v200 = vld [vmem:[#allocation5 + $0x38] sm:$0xf]
    %v201 = vld [vmem:[#allocation5 + $0x3c] sm:$0xf]
    %s202 = scalar_lea.vmem [#allocation5], 64
    %v203 = vld [vmem:[%s202] sm:$0xf]
    %v204 = vld [vmem:[%s202 + $0x4] sm:$0xf]
    %v205 = vld [vmem:[%s202 + $0x8] sm:$0xf]
    %v206 = vld [vmem:[%s202 + $0xc] sm:$0xf]
    %v207 = vld [vmem:[%s202 + $0x10] sm:$0xf]
    %v208 = vld [vmem:[%s202 + $0x14] sm:$0xf]
    %v209 = vld [vmem:[%s202 + $0x18] sm:$0xf]
    %v210 = vld [vmem:[%s202 + $0x1c] sm:$0xf]
    %v211 = vld [vmem:[%s202 + $0x20] sm:$0xf]
    %v212 = vld [vmem:[%s202 + $0x24] sm:$0xf]
    %v213 = vld [vmem:[%s202 + $0x28] sm:$0xf]
    %v214 = vld [vmem:[%s202 + $0x2c] sm:$0xf]
    %v215 = vld [vmem:[%s202 + $0x30] sm:$0xf]
    %v216 = vld [vmem:[%s202 + $0x34] sm:$0xf]
    %v217 = vld [vmem:[%s202 + $0x38] sm:$0xf]
    %v218 = vld [vmem:[%s202 + $0x3c] sm:$0xf]
    %v235 = vunpack.c.l.b16 %v203
    %v236 = vunpack.c.l.b16 %v204
    %v237 = vunpack.c.l.b16 %v205
    %v238 = vunpack.c.l.b16 %v206
    %v239 = vunpack.c.l.b16 %v207
    %v240 = vunpack.c.l.b16 %v208
    %v241 = vunpack.c.l.b16 %v209
    %v242 = vunpack.c.l.b16 %v210
    %v243 = vunpack.c.l.b16 %v211
    %v244 = vunpack.c.l.b16 %v212
    %v245 = vunpack.c.l.b16 %v213
    %v246 = vunpack.c.l.b16 %v214
    %v247 = vunpack.c.l.b16 %v215
    %v248 = vunpack.c.l.b16 %v216
    %v249 = vunpack.c.l.b16 %v217
    %v250 = vunpack.c.l.b16 %v218
    %v251 = vpack.c.b16 %v236, %v235
    %v252 = vpack.c.b16 %v238, %v237
    %v253 = vpack.c.b16 %v240, %v239
    %v254 = vpack.c.b16 %v242, %v241
    %v255 = vpack.c.b16 %v244, %v243
    %v256 = vpack.c.b16 %v246, %v245
    %v257 = vpack.c.b16 %v248, %v247
    %v258 = vpack.c.b16 %v250, %v249
    %267 = vmatprep.subr.bf16.mxu0 0
    %268 = vmatpush1.bf16.msra.mxu0 %v251
    %269 = vmatprep.subr.bf16.mxu0 0
    %270 = vmatpush1.bf16.msra.mxu0 %v252
    %271 = vmatprep.subr.bf16.mxu0 0
    %272 = vmatpush1.bf16.msra.mxu0 %v253
    %273 = vmatprep.subr.bf16.mxu0 0
    %274 = vmatpush1.bf16.msra.mxu0 %v254
    %275 = vmatprep.subr.bf16.mxu0 0
    %276 = vmatpush1.bf16.msra.mxu0 %v255
    %277 = vmatprep.subr.bf16.mxu0 0
    %278 = vmatpush1.bf16.msra.mxu0 %v256
    %279 = vmatprep.subr.bf16.mxu0 0
    %280 = vmatpush1.bf16.msra.mxu0 %v257
    %281 = vmatprep.subr.bf16.mxu0 0
    %282 = vmatpush1.bf16.msra.mxu0 %v258
    %283 = vmatprep.subr.bf16.mxu0 0
    %284 = vmatpush1.bf16.msra.mxu0 0
    %285 = vmatprep.subr.bf16.mxu0 0
    %286 = vmatpush1.bf16.msra.mxu0 0
    %287 = vmatprep.subr.bf16.mxu0 0
    %288 = vmatpush1.bf16.msra.mxu0 0
    %289 = vmatprep.subr.bf16.mxu0 0
    %290 = vmatpush1.bf16.msra.mxu0 0
    %291 = vmatprep.subr.bf16.mxu0 0
    %292 = vmatpush1.bf16.msra.mxu0 0
    %293 = vmatprep.subr.bf16.mxu0 0
    %294 = vmatpush1.bf16.msra.mxu0 0
    %295 = vmatprep.subr.bf16.mxu0 0
    %296 = vmatpush1.bf16.msra.mxu0 0
    %297 = vmatprep.subr.bf16.mxu0 0
    %298 = vmatpush1.bf16.msra.mxu0 0
    %299 = vmatprep.mubr.bf16.mxu0 0
    %300 = vmatmul.mubr.bf16.gmra.mrb[0].mxu0 %v182
    %v301 = vpop.f32.mrb[0].mxu0
    %v302 = vadd.f32 0.0, %v301
    %v303 = vpop.f32.mrb[0].mxu0
    %v304 = vpop.f32.mrb[0].mxu0
    %v305 = vadd.f32 0.0, %v304
    %v306 = vpop.f32.mrb[0].mxu0
    %307 = vmatprep.mubr.bf16.mxu0 0
    %308 = vmatmul.mubr.bf16.gmra.mrb[0].mxu0 %v183
    %v309 = vpop.f32.mrb[0].mxu0
    %v310 = vadd.f32 0.0, %v309
    %v311 = vpop.f32.mrb[0].mxu0
    %v312 = vpop.f32.mrb[0].mxu0
    %v313 = vadd.f32 0.0, %v312
    %v314 = vpop.f32.mrb[0].mxu0
    %315 = vdwg.mxu0
    %v332 = vunpack.c.l.b16 %v186
    %v333 = vunpack.c.l.b16 %v187
    %v334 = vunpack.c.l.b16 %v188
    %v335 = vunpack.c.l.b16 %v189
    %v336 = vunpack.c.l.b16 %v190
    %v337 = vunpack.c.l.b16 %v191
    %v338 = vunpack.c.l.b16 %v192
    %v339 = vunpack.c.l.b16 %v193
    %v340 = vunpack.c.l.b16 %v194
    %v341 = vunpack.c.l.b16 %v195
    %v342 = vunpack.c.l.b16 %v196
    %v343 = vunpack.c.l.b16 %v197
    %v344 = vunpack.c.l.b16 %v198
    %v345 = vunpack.c.l.b16 %v199
    %v346 = vunpack.c.l.b16 %v200
    %v347 = vunpack.c.l.b16 %v201
    %v348 = vpack.c.b16 %v333, %v332
    %v349 = vpack.c.b16 %v335, %v334
    %v350 = vpack.c.b16 %v337, %v336
    %v351 = vpack.c.b16 %v339, %v338
    %v352 = vpack.c.b16 %v341, %v340
    %v353 = vpack.c.b16 %v343, %v342
    %v354 = vpack.c.b16 %v345, %v344
    %v355 = vpack.c.b16 %v347, %v346
    %364 = vmatprep.subr.bf16.mxu0 0
    %365 = vmatpush1.bf16.msra.mxu0 %v348
    %366 = vmatprep.subr.bf16.mxu0 0
    %367 = vmatpush1.bf16.msra.mxu0 %v349
    %368 = vmatprep.subr.bf16.mxu0 0
    %369 = vmatpush1.bf16.msra.mxu0 %v350
    %370 = vmatprep.subr.bf16.mxu0 0
    %371 = vmatpush1.bf16.msra.mxu0 %v351
    %372 = vmatprep.subr.bf16.mxu0 0
    %373 = vmatpush1.bf16.msra.mxu0 %v352
    %374 = vmatprep.subr.bf16.mxu0 0
    %375 = vmatpush1.bf16.msra.mxu0 %v353
    %376 = vmatprep.subr.bf16.mxu0 0
    %377 = vmatpush1.bf16.msra.mxu0 %v354
    %378 = vmatprep.subr.bf16.mxu0 0
    %379 = vmatpush1.bf16.msra.mxu0 %v355
    %380 = vmatprep.subr.bf16.mxu0 0
    %381 = vmatpush1.bf16.msra.mxu0 0
    %382 = vmatprep.subr.bf16.mxu0 0
    %383 = vmatpush1.bf16.msra.mxu0 0
    %384 = vmatprep.subr.bf16.mxu0 0
    %385 = vmatpush1.bf16.msra.mxu0 0
    %386 = vmatprep.subr.bf16.mxu0 0
    %387 = vmatpush1.bf16.msra.mxu0 0
    %388 = vmatprep.subr.bf16.mxu0 0
    %389 = vmatpush1.bf16.msra.mxu0 0
    %390 = vmatprep.subr.bf16.mxu0 0
    %391 = vmatpush1.bf16.msra.mxu0 0
    %392 = vmatprep.subr.bf16.mxu0 0
    %393 = vmatpush1.bf16.msra.mxu0 0
    %394 = vmatprep.subr.bf16.mxu0 0
    %395 = vmatpush1.bf16.msra.mxu0 0
    %396 = vmatprep.mubr.bf16.mxu0 0
    %397 = vmatmul.mubr.bf16.gmra.mrb[0].mxu0 %v180
    %v398 = vpop.f32.mrb[0].mxu0
    %v399 = vadd.f32 %v302, %v398
    %v400 = vpop.f32.mrb[0].mxu0
    %v401 = vpop.f32.mrb[0].mxu0
    %v402 = vadd.f32 %v305, %v401
    %v403 = vpop.f32.mrb[0].mxu0
    %404 = vmatprep.mubr.bf16.mxu0 0
    %405 = vmatmul.mubr.bf16.gmra.mrb[0].mxu0 %v181
    %v406 = vpop.f32.mrb[0].mxu0
    %v407 = vadd.f32 %v310, %v406
    %v408 = vpop.f32.mrb[0].mxu0
    %v409 = vpop.f32.mrb[0].mxu0
    %v410 = vadd.f32 %v313, %v409
    %v411 = vpop.f32.mrb[0].mxu0
    %412 = vdwg.mxu0
    %s413 = scalar_lea.vmem [#allocation5], 128
    %v414 = vld [vmem:[%s413] sm:$0xf]
    %v415 = vld [vmem:[%s413 + $0x4] sm:$0xf]
    %v416 = vld [vmem:[%s413 + $0x8] sm:$0xf]
    %v417 = vld [vmem:[%s413 + $0xc] sm:$0xf]
    %v418 = vld [vmem:[%s413 + $0x10] sm:$0xf]
    %v419 = vld [vmem:[%s413 + $0x14] sm:$0xf]
    %v420 = vld [vmem:[%s413 + $0x18] sm:$0xf]
    %v421 = vld [vmem:[%s413 + $0x1c] sm:$0xf]
    %v422 = vld [vmem:[%s413 + $0x20] sm:$0xf]
    %v423 = vld [vmem:[%s413 + $0x24] sm:$0xf]
    %v424 = vld [vmem:[%s413 + $0x28] sm:$0xf]
    %v425 = vld [vmem:[%s413 + $0x2c] sm:$0xf]
    %v426 = vld [vmem:[%s413 + $0x30] sm:$0xf]
    %v427 = vld [vmem:[%s413 + $0x34] sm:$0xf]
    %v428 = vld [vmem:[%s413 + $0x38] sm:$0xf]
    %v429 = vld [vmem:[%s413 + $0x3c] sm:$0xf]
    %v446 = vunpack.c.l.b16 %v414
    %v447 = vunpack.c.l.b16 %v415
    %v448 = vunpack.c.l.b16 %v416
    %v449 = vunpack.c.l.b16 %v417
    %v450 = vunpack.c.l.b16 %v418
    %v451 = vunpack.c.l.b16 %v419
    %v452 = vunpack.c.l.b16 %v420
    %v453 = vunpack.c.l.b16 %v421
    %v454 = vunpack.c.l.b16 %v422
    %v455 = vunpack.c.l.b16 %v423
    %v456 = vunpack.c.l.b16 %v424
    %v457 = vunpack.c.l.b16 %v425
    %v458 = vunpack.c.l.b16 %v426
    %v459 = vunpack.c.l.b16 %v427
    %v460 = vunpack.c.l.b16 %v428
    %v461 = vunpack.c.l.b16 %v429
    %v462 = vpack.c.b16 %v447, %v446
    %v463 = vpack.c.b16 %v449, %v448
    %v464 = vpack.c.b16 %v451, %v450
    %v465 = vpack.c.b16 %v453, %v452
    %v466 = vpack.c.b16 %v455, %v454
    %v467 = vpack.c.b16 %v457, %v456
    %v468 = vpack.c.b16 %v459, %v458
    %v469 = vpack.c.b16 %v461, %v460
    %478 = vmatprep.subr.bf16.mxu0 0
    %479 = vmatpush1.bf16.msra.mxu0 %v462
    %480 = vmatprep.subr.bf16.mxu0 0
    %481 = vmatpush1.bf16.msra.mxu0 %v463
    %482 = vmatprep.subr.bf16.mxu0 0
    %483 = vmatpush1.bf16.msra.mxu0 %v464
    %484 = vmatprep.subr.bf16.mxu0 0
    %485 = vmatpush1.bf16.msra.mxu0 %v465
    %486 = vmatprep.subr.bf16.mxu0 0
    %487 = vmatpush1.bf16.msra.mxu0 %v466
    %488 = vmatprep.subr.bf16.mxu0 0
    %489 = vmatpush1.bf16.msra.mxu0 %v467
    %490 = vmatprep.subr.bf16.mxu0 0
    %491 = vmatpush1.bf16.msra.mxu0 %v468
    %492 = vmatprep.subr.bf16.mxu0 0
    %493 = vmatpush1.bf16.msra.mxu0 %v469
    %494 = vmatprep.subr.bf16.mxu0 0
    %495 = vmatpush1.bf16.msra.mxu0 0
    %496 = vmatprep.subr.bf16.mxu0 0
    %497 = vmatpush1.bf16.msra.mxu0 0
    %498 = vmatprep.subr.bf16.mxu0 0
    %499 = vmatpush1.bf16.msra.mxu0 0
    %500 = vmatprep.subr.bf16.mxu0 0
    %501 = vmatpush1.bf16.msra.mxu0 0
    %502 = vmatprep.subr.bf16.mxu0 0
    %503 = vmatpush1.bf16.msra.mxu0 0
    %504 = vmatprep.subr.bf16.mxu0 0
    %505 = vmatpush1.bf16.msra.mxu0 0
    %506 = vmatprep.subr.bf16.mxu0 0
    %507 = vmatpush1.bf16.msra.mxu0 0
    %508 = vmatprep.subr.bf16.mxu0 0
    %509 = vmatpush1.bf16.msra.mxu0 0
    %510 = vmatprep.mubr.bf16.mxu0 0
    %511 = vmatmul.mubr.bf16.gmra.mrb[0].mxu0 %v184
    %v512 = vpop.f32.mrb[0].mxu0
    %v513 = vadd.f32 0.0, %v512
    %v514 = vpop.f32.mrb[0].mxu0
    %v515 = vpop.f32.mrb[0].mxu0
    %v516 = vadd.f32 0.0, %v515
    %v517 = vpop.f32.mrb[0].mxu0
    %518 = vmatprep.mubr.bf16.mxu0 0
    %519 = vmatmul.mubr.bf16.gmra.mrb[0].mxu0 %v185
    %v520 = vpop.f32.mrb[0].mxu0
    %v521 = vadd.f32 0.0, %v520
    %v522 = vpop.f32.mrb[0].mxu0
    %v523 = vpop.f32.mrb[0].mxu0
    %v524 = vadd.f32 0.0, %v523
    %v525 = vpop.f32.mrb[0].mxu0
    %526 = vdwg.mxu0
    %v527 = vadd.f32 %v399, %v513
    %v528 = vadd.f32 %v402, %v516
    %v529 = vadd.f32 %v407, %v521
    %v530 = vadd.f32 %v410, %v524
    %v531 = vadd.f32 %v527, %v528
    %v532 = vadd.f32 %v531, %v529
    %v533 = vadd.f32 %v532, %v530
    %v534 = vrot.slane %v533, 4
    %v535 = vadd.f32 %v533, %v534
    %v536 = vrot.slane %v535, 2
    %v537 = vadd.f32 %v535, %v536
    %v538 = vrot.slane %v537, 1
    %v539 = vadd.f32 %v537, %v538
    %540 = vrot.lane.b32.xlu0 %v539, 8
    %v541 = vpop.permute.xlu0 %540
    %v542 = vadd.f32 %v539, %v541
    %543 = vrot.lane.b32.xlu0 %v542, 16
    %v544 = vpop.permute.xlu0 %543
    %v545 = vadd.f32 %v542, %v544
    %546 = vrot.lane.b32.xlu0 %v545, 32
    %v547 = vpop.permute.xlu0 %546
    %v548 = vadd.f32 %v545, %v547
    %549 = vrot.lane.b32.xlu0 %v548, 64
    %v550 = vpop.permute.xlu0 %549
    %v551 = vadd.f32 %v548, %v550
    %v552 = vmul.f32 %v551, 0.001953125
    %v553 = vlaneseq
    %v554 = vshrl.u32 %v553, 7
    %v555 = vsub.s32 0, %v554
    %v556 = vrot.slane %v552, %v555
    %v557 = vsub.f32 %v527, %v556
    %v558 = vsub.f32 %v528, %v556
    %v559 = vsub.f32 %v529, %v556
    %v560 = vsub.f32 %v530, %v556
    %v561 = vmul.f32 %v557, %v557
    %v562 = vmul.f32 %v558, %v558
    %v563 = vmul.f32 %v559, %v559
    %v564 = vmul.f32 %v560, %v560
    %v565 = vadd.f32 %v561, %v562
    %v566 = vadd.f32 %v565, %v563
    %v567 = vadd.f32 %v566, %v564
    %v568 = vrot.slane %v567, 4
    %v569 = vadd.f32 %v567, %v568
    %v570 = vrot.slane %v569, 2
    %v571 = vadd.f32 %v569, %v570
    %v572 = vrot.slane %v571, 1
    %v573 = vadd.f32 %v571, %v572
    %574 = vrot.lane.b32.xlu0 %v573, 8
    %v575 = vpop.permute.xlu0 %574
    %v576 = vadd.f32 %v573, %v575
    %577 = vrot.lane.b32.xlu0 %v576, 16
    %v578 = vpop.permute.xlu0 %577
    %v579 = vadd.f32 %v576, %v578
    %580 = vrot.lane.b32.xlu0 %v579, 32
    %v581 = vpop.permute.xlu0 %580
    %v582 = vadd.f32 %v579, %v581
    %583 = vrot.lane.b32.xlu0 %v582, 64
    %v584 = vpop.permute.xlu0 %583
    %v585 = vadd.f32 %v582, %v584
    %v586 = vmul.f32 %v585, 0.001953125
    %v587 = vadd.f32 %v586, 1e-05
    %v588 = vrsqrt.pop %v587
    %v589 = vmul.f32 %v126, %v588
    %v591 = vlaneseq
    %v592 = vshrl.u32 %v591, 7
    %v593 = vsub.s32 0, %v592
    %v594 = vrot.slane %v589, %v593
    %v596 = vmul.f32 %v557, %v594
    %v597 = vmul.f32 %v558, %v594
    %v598 = vmul.f32 %v559, %v594
    %v599 = vmul.f32 %v560, %v594
    %v601 = vlaneseq
    %v602 = vshrl.u32 %v601, 7
    %v603 = vsub.s32 0, %v602
    %v604 = vrot.slane %v127, %v603
    %v606 = vadd.f32 %v596, %v604
    %v607 = vadd.f32 %v597, %v604
    %v608 = vadd.f32 %v598, %v604
    %v609 = vadd.f32 %v599, %v604
    %v610 = vmax.f32 %v606, 0.0
    %v611 = vmax.f32 %v607, 0.0
    %v612 = vmax.f32 %v608, 0.0
    %v613 = vmax.f32 %v609, 0.0
    %v614 = vrot.slane %v610, 7
    %v615 = vrot.slane %v611, 7
    %v616 = vrot.slane %v612, 7
    %v617 = vrot.slane %v613, 7
    %v618 = vsel %vm138, %v616, %v617
    %v619 = vsel %vm138, %v615, %v616
    %v620 = vsel %vm138, %v614, %v615
    %v621 = vsel %vm138, %v617, %v614
    %v622 = vsel %vm147, 0.0, %v621
    %v623 = vsel %vm148, 0.0, %v620
    %v624 = vsel %vm149, 0.0, %v619
    %v625 = vsel %vm150, 0.0, %v618
    %v626 = vrot.slane %v610, 1
    %v627 = vrot.slane %v611, 1
    %v628 = vrot.slane %v612, 1
    %v629 = vrot.slane %v613, 1
    %v630 = vsel %vm163, %v628, %v629
    %v631 = vsel %vm163, %v627, %v628
    %v632 = vsel %vm163, %v626, %v627
    %v633 = vsel %vm163, %v629, %v626
    %v634 = vsel %vm172, 0.0, %v632
    %v635 = vsel %vm173, 0.0, %v631
    %v636 = vsel %vm174, 0.0, %v630
    %v637 = vsel %vm175, 0.0, %v633
    %v638 = vpack.c.bf16 %v623, %v622
    %v639 = vpack.c.bf16 %v625, %v624
    %v640 = vpack.c.bf16 %v611, %v610
    %v641 = vpack.c.bf16 %v613, %v612
    %v642 = vpack.c.bf16 %v635, %v634
    %v643 = vpack.c.bf16 %v637, %v636
    %v644 = vld [vmem:[#allocation7] sm:$0xf]
    %v645 = vld [vmem:[#allocation7 + $0x4] sm:$0xf]
    %v646 = vld [vmem:[#allocation7 + $0x8] sm:$0xf]
    %v647 = vld [vmem:[#allocation7 + $0xc] sm:$0xf]
    %v648 = vld [vmem:[#allocation7 + $0x10] sm:$0xf]
    %v649 = vld [vmem:[#allocation7 + $0x14] sm:$0xf]
    %v650 = vld [vmem:[#allocation7 + $0x18] sm:$0xf]
    %v651 = vld [vmem:[#allocation7 + $0x1c] sm:$0xf]
    %v652 = vld [vmem:[#allocation7 + $0x20] sm:$0xf]
    %v653 = vld [vmem:[#allocation7 + $0x24] sm:$0xf]
    %v654 = vld [vmem:[#allocation7 + $0x28] sm:$0xf]
    %v655 = vld [vmem:[#allocation7 + $0x2c] sm:$0xf]
    %v656 = vld [vmem:[#allocation7 + $0x30] sm:$0xf]
    %v657 = vld [vmem:[#allocation7 + $0x34] sm:$0xf]
    %v658 = vld [vmem:[#allocation7 + $0x38] sm:$0xf]
    %v659 = vld [vmem:[#allocation7 + $0x3c] sm:$0xf]
    %s660 = scalar_lea.vmem [#allocation7], 64
    %v661 = vld [vmem:[%s660] sm:$0xf]
    %v662 = vld [vmem:[%s660 + $0x4] sm:$0xf]
    %v663 = vld [vmem:[%s660 + $0x8] sm:$0xf]
    %v664 = vld [vmem:[%s660 + $0xc] sm:$0xf]
    %v665 = vld [vmem:[%s660 + $0x10] sm:$0xf]
    %v666 = vld [vmem:[%s660 + $0x14] sm:$0xf]
    %v667 = vld [vmem:[%s660 + $0x18] sm:$0xf]
    %v668 = vld [vmem:[%s660 + $0x1c] sm:$0xf]
    %v669 = vld [vmem:[%s660 + $0x20] sm:$0xf]
    %v670 = vld [vmem:[%s660 + $0x24] sm:$0xf]
    %v671 = vld [vmem:[%s660 + $0x28] sm:$0xf]
    %v672 = vld [vmem:[%s660 + $0x2c] sm:$0xf]
    %v673 = vld [vmem:[%s660 + $0x30] sm:$0xf]
    %v674 = vld [vmem:[%s660 + $0x34] sm:$0xf]
    %v675 = vld [vmem:[%s660 + $0x38] sm:$0xf]
    %v676 = vld [vmem:[%s660 + $0x3c] sm:$0xf]
    %v693 = vunpack.c.l.b16 %v661
    %v694 = vunpack.c.l.b16 %v662
    %v695 = vunpack.c.l.b16 %v663
    %v696 = vunpack.c.l.b16 %v664
    %v697 = vunpack.c.l.b16 %v665
    %v698 = vunpack.c.l.b16 %v666
    %v699 = vunpack.c.l.b16 %v667
    %v700 = vunpack.c.l.b16 %v668
    %v701 = vunpack.c.l.b16 %v669
    %v702 = vunpack.c.l.b16 %v670
    %v703 = vunpack.c.l.b16 %v671
    %v704 = vunpack.c.l.b16 %v672
    %v705 = vunpack.c.l.b16 %v673
    %v706 = vunpack.c.l.b16 %v674
    %v707 = vunpack.c.l.b16 %v675
    %v708 = vunpack.c.l.b16 %v676
    %v709 = vpack.c.b16 %v694, %v693
    %v710 = vpack.c.b16 %v696, %v695
    %v711 = vpack.c.b16 %v698, %v697
    %v712 = vpack.c.b16 %v700, %v699
    %v713 = vpack.c.b16 %v702, %v701
    %v714 = vpack.c.b16 %v704, %v703
    %v715 = vpack.c.b16 %v706, %v705
    %v716 = vpack.c.b16 %v708, %v707
    %725 = vmatprep.subr.bf16.mxu0 0
    %726 = vmatpush1.bf16.msra.mxu0 %v709
    %727 = vmatprep.subr.bf16.mxu0 0
    %728 = vmatpush1.bf16.msra.mxu0 %v710
    %729 = vmatprep.subr.bf16.mxu0 0
    %730 = vmatpush1.bf16.msra.mxu0 %v711
    %731 = vmatprep.subr.bf16.mxu0 0
    %732 = vmatpush1.bf16.msra.mxu0 %v712
    %733 = vmatprep.subr.bf16.mxu0 0
    %734 = vmatpush1.bf16.msra.mxu0 %v713
    %735 = vmatprep.subr.bf16.mxu0 0
    %736 = vmatpush1.bf16.msra.mxu0 %v714
    %737 = vmatprep.subr.bf16.mxu0 0
    %738 = vmatpush1.bf16.msra.mxu0 %v715
    %739 = vmatprep.subr.bf16.mxu0 0
    %740 = vmatpush1.bf16.msra.mxu0 %v716
    %741 = vmatprep.subr.bf16.mxu0 0
    %742 = vmatpush1.bf16.msra.mxu0 0
    %743 = vmatprep.subr.bf16.mxu0 0
    %744 = vmatpush1.bf16.msra.mxu0 0
    %745 = vmatprep.subr.bf16.mxu0 0
    %746 = vmatpush1.bf16.msra.mxu0 0
    %747 = vmatprep.subr.bf16.mxu0 0
    %748 = vmatpush1.bf16.msra.mxu0 0
    %749 = vmatprep.subr.bf16.mxu0 0
    %750 = vmatpush1.bf16.msra.mxu0 0
    %751 = vmatprep.subr.bf16.mxu0 0
    %752 = vmatpush1.bf16.msra.mxu0 0
    %753 = vmatprep.subr.bf16.mxu0 0
    %754 = vmatpush1.bf16.msra.mxu0 0
    %755 = vmatprep.subr.bf16.mxu0 0
    %756 = vmatpush1.bf16.msra.mxu0 0
    %757 = vmatprep.mubr.bf16.mxu0 0
    %758 = vmatmul.mubr.bf16.gmra.mrb[0].mxu0 %v640
    %v759 = vpop.f32.mrb[0].mxu0
    %v760 = vadd.f32 0.0, %v759
    %v761 = vpop.f32.mrb[0].mxu0
    %v762 = vpop.f32.mrb[0].mxu0
    %v763 = vadd.f32 0.0, %v762
    %v764 = vpop.f32.mrb[0].mxu0
    %765 = vmatprep.mubr.bf16.mxu0 0
    %766 = vmatmul.mubr.bf16.gmra.mrb[0].mxu0 %v641
    %v767 = vpop.f32.mrb[0].mxu0
    %v768 = vadd.f32 0.0, %v767
    %v769 = vpop.f32.mrb[0].mxu0
    %v770 = vpop.f32.mrb[0].mxu0
    %v771 = vadd.f32 0.0, %v770
    %v772 = vpop.f32.mrb[0].mxu0
    %773 = vdwg.mxu0
    %v790 = vunpack.c.l.b16 %v644
    %v791 = vunpack.c.l.b16 %v645
    %v792 = vunpack.c.l.b16 %v646
    %v793 = vunpack.c.l.b16 %v647
    %v794 = vunpack.c.l.b16 %v648
    %v795 = vunpack.c.l.b16 %v649
    %v796 = vunpack.c.l.b16 %v650
    %v797 = vunpack.c.l.b16 %v651
    %v798 = vunpack.c.l.b16 %v652
    %v799 = vunpack.c.l.b16 %v653
    %v800 = vunpack.c.l.b16 %v654
    %v801 = vunpack.c.l.b16 %v655
    %v802 = vunpack.c.l.b16 %v656
    %v803 = vunpack.c.l.b16 %v657
    %v804 = vunpack.c.l.b16 %v658
    %v805 = vunpack.c.l.b16 %v659
    %v806 = vpack.c.b16 %v791, %v790
    %v807 = vpack.c.b16 %v793, %v792
    %v808 = vpack.c.b16 %v795, %v794
    %v809 = vpack.c.b16 %v797, %v796
    %v810 = vpack.c.b16 %v799, %v798
    %v811 = vpack.c.b16 %v801, %v800
    %v812 = vpack.c.b16 %v803, %v802
    %v813 = vpack.c.b16 %v805, %v804
    %822 = vmatprep.subr.bf16.mxu0 0
    %823 = vmatpush1.bf16.msra.mxu0 %v806
    %824 = vmatprep.subr.bf16.mxu0 0
    %825 = vmatpush1.bf16.msra.mxu0 %v807
    %826 = vmatprep.subr.bf16.mxu0 0
    %827 = vmatpush1.bf16.msra.mxu0 %v808
    %828 = vmatprep.subr.bf16.mxu0 0
    %829 = vmatpush1.bf16.msra.mxu0 %v809
    %830 = vmatprep.subr.bf16.mxu0 0
    %831 = vmatpush1.bf16.msra.mxu0 %v810
    %832 = vmatprep.subr.bf16.mxu0 0
    %833 = vmatpush1.bf16.msra.mxu0 %v811
    %834 = vmatprep.subr.bf16.mxu0 0
    %835 = vmatpush1.bf16.msra.mxu0 %v812
    %836 = vmatprep.subr.bf16.mxu0 0
    %837 = vmatpush1.bf16.msra.mxu0 %v813
    %838 = vmatprep.subr.bf16.mxu0 0
    %839 = vmatpush1.bf16.msra.mxu0 0
    %840 = vmatprep.subr.bf16.mxu0 0
    %841 = vmatpush1.bf16.msra.mxu0 0
    %842 = vmatprep.subr.bf16.mxu0 0
    %843 = vmatpush1.bf16.msra.mxu0 0
    %844 = vmatprep.subr.bf16.mxu0 0
    %845 = vmatpush1.bf16.msra.mxu0 0
    %846 = vmatprep.subr.bf16.mxu0 0
    %847 = vmatpush1.bf16.msra.mxu0 0
    %848 = vmatprep.subr.bf16.mxu0 0
    %849 = vmatpush1.bf16.msra.mxu0 0
    %850 = vmatprep.subr.bf16.mxu0 0
    %851 = vmatpush1.bf16.msra.mxu0 0
    %852 = vmatprep.subr.bf16.mxu0 0
    %853 = vmatpush1.bf16.msra.mxu0 0
    %854 = vmatprep.mubr.bf16.mxu0 0
    %855 = vmatmul.mubr.bf16.gmra.mrb[0].mxu0 %v638
    %v856 = vpop.f32.mrb[0].mxu0
    %v857 = vadd.f32 %v760, %v856
    %v858 = vpop.f32.mrb[0].mxu0
    %v859 = vpop.f32.mrb[0].mxu0
    %v860 = vadd.f32 %v763, %v859
    %v861 = vpop.f32.mrb[0].mxu0
    %862 = vmatprep.mubr.bf16.mxu0 0
    %863 = vmatmul.mubr.bf16.gmra.mrb[0].mxu0 %v639
    %v864 = vpop.f32.mrb[0].mxu0
    %v865 = vadd.f32 %v768, %v864
    %v866 = vpop.f32.mrb[0].mxu0
    %v867 = vpop.f32.mrb[0].mxu0
    %v868 = vadd.f32 %v771, %v867
    %v869 = vpop.f32.mrb[0].mxu0
    %870 = vdwg.mxu0
    %s871 = scalar_lea.vmem [#allocation7], 128
    %v872 = vld [vmem:[%s871] sm:$0xf]
    %v873 = vld [vmem:[%s871 + $0x4] sm:$0xf]
    %v874 = vld [vmem:[%s871 + $0x8] sm:$0xf]
    %v875 = vld [vmem:[%s871 + $0xc] sm:$0xf]
    %v876 = vld [vmem:[%s871 + $0x10] sm:$0xf]
    %v877 = vld [vmem:[%s871 + $0x14] sm:$0xf]
    %v878 = vld [vmem:[%s871 + $0x18] sm:$0xf]
    %v879 = vld [vmem:[%s871 + $0x1c] sm:$0xf]
    %v880 = vld [vmem:[%s871 + $0x20] sm:$0xf]
    %v881 = vld [vmem:[%s871 + $0x24] sm:$0xf]
    %v882 = vld [vmem:[%s871 + $0x28] sm:$0xf]
    %v883 = vld [vmem:[%s871 + $0x2c] sm:$0xf]
    %v884 = vld [vmem:[%s871 + $0x30] sm:$0xf]
    %v885 = vld [vmem:[%s871 + $0x34] sm:$0xf]
    %v886 = vld [vmem:[%s871 + $0x38] sm:$0xf]
    %v887 = vld [vmem:[%s871 + $0x3c] sm:$0xf]
    %v904 = vunpack.c.l.b16 %v872
    %v905 = vunpack.c.l.b16 %v873
    %v906 = vunpack.c.l.b16 %v874
    %v907 = vunpack.c.l.b16 %v875
    %v908 = vunpack.c.l.b16 %v876
    %v909 = vunpack.c.l.b16 %v877
    %v910 = vunpack.c.l.b16 %v878
    %v911 = vunpack.c.l.b16 %v879
    %v912 = vunpack.c.l.b16 %v880
    %v913 = vunpack.c.l.b16 %v881
    %v914 = vunpack.c.l.b16 %v882
    %v915 = vunpack.c.l.b16 %v883
    %v916 = vunpack.c.l.b16 %v884
    %v917 = vunpack.c.l.b16 %v885
    %v918 = vunpack.c.l.b16 %v886
    %v919 = vunpack.c.l.b16 %v887
    %v920 = vpack.c.b16 %v905, %v904
    %v921 = vpack.c.b16 %v907, %v906
    %v922 = vpack.c.b16 %v909, %v908
    %v923 = vpack.c.b16 %v911, %v910
    %v924 = vpack.c.b16 %v913, %v912
    %v925 = vpack.c.b16 %v915, %v914
    %v926 = vpack.c.b16 %v917, %v916
    %v927 = vpack.c.b16 %v919, %v918
    %936 = vmatprep.subr.bf16.mxu0 0
    %937 = vmatpush1.bf16.msra.mxu0 %v920
    %938 = vmatprep.subr.bf16.mxu0 0
    %939 = vmatpush1.bf16.msra.mxu0 %v921
    %940 = vmatprep.subr.bf16.mxu0 0
    %941 = vmatpush1.bf16.msra.mxu0 %v922
    %942 = vmatprep.subr.bf16.mxu0 0
    %943 = vmatpush1.bf16.msra.mxu0 %v923
    %944 = vmatprep.subr.bf16.mxu0 0
    %945 = vmatpush1.bf16.msra.mxu0 %v924
    %946 = vmatprep.subr.bf16.mxu0 0
    %947 = vmatpush1.bf16.msra.mxu0 %v925
    %948 = vmatprep.subr.bf16.mxu0 0
    %949 = vmatpush1.bf16.msra.mxu0 %v926
    %950 = vmatprep.subr.bf16.mxu0 0
    %951 = vmatpush1.bf16.msra.mxu0 %v927
    %952 = vmatprep.subr.bf16.mxu0 0
    %953 = vmatpush1.bf16.msra.mxu0 0
    %954 = vmatprep.subr.bf16.mxu0 0
    %955 = vmatpush1.bf16.msra.mxu0 0
    %956 = vmatprep.subr.bf16.mxu0 0
    %957 = vmatpush1.bf16.msra.mxu0 0
    %958 = vmatprep.subr.bf16.mxu0 0
    %959 = vmatpush1.bf16.msra.mxu0 0
    %960 = vmatprep.subr.bf16.mxu0 0
    %961 = vmatpush1.bf16.msra.mxu0 0
    %962 = vmatprep.subr.bf16.mxu0 0
    %963 = vmatpush1.bf16.msra.mxu0 0
    %964 = vmatprep.subr.bf16.mxu0 0
    %965 = vmatpush1.bf16.msra.mxu0 0
    %966 = vmatprep.subr.bf16.mxu0 0
    %967 = vmatpush1.bf16.msra.mxu0 0
    %968 = vmatprep.mubr.bf16.mxu0 0
    %969 = vmatmul.mubr.bf16.gmra.mrb[0].mxu0 %v642
    %v970 = vpop.f32.mrb[0].mxu0
    %v971 = vadd.f32 0.0, %v970
    %v972 = vpop.f32.mrb[0].mxu0
    %v973 = vpop.f32.mrb[0].mxu0
    %v974 = vadd.f32 0.0, %v973
    %v975 = vpop.f32.mrb[0].mxu0
    %976 = vmatprep.mubr.bf16.mxu0 0
    %977 = vmatmul.mubr.bf16.gmra.mrb[0].mxu0 %v643
    %v978 = vpop.f32.mrb[0].mxu0
    %v979 = vadd.f32 0.0, %v978
    %v980 = vpop.f32.mrb[0].mxu0
    %v981 = vpop.f32.mrb[0].mxu0
    %v982 = vadd.f32 0.0, %v981
    %v983 = vpop.f32.mrb[0].mxu0
    %984 = vdwg.mxu0
    %v985 = vadd.f32 %v857, %v971
    %v986 = vadd.f32 %v860, %v974
    %v987 = vadd.f32 %v865, %v979
    %v988 = vadd.f32 %v868, %v982
    %v989 = vadd.f32 %v985, %v986
    %v990 = vadd.f32 %v989, %v987
    %v991 = vadd.f32 %v990, %v988
    %v992 = vrot.slane %v991, 4
    %v993 = vadd.f32 %v991, %v992
    %v994 = vrot.slane %v993, 2
    %v995 = vadd.f32 %v993, %v994
    %v996 = vrot.slane %v995, 1
    %v997 = vadd.f32 %v995, %v996
    %998 = vrot.lane.b32.xlu0 %v997, 8
    %v999 = vpop.permute.xlu0 %998
    %v1000 = vadd.f32 %v997, %v999
    %1001 = vrot.lane.b32.xlu0 %v1000, 16
    %v1002 = vpop.permute.xlu0 %1001
    %v1003 = vadd.f32 %v1000, %v1002
    %1004 = vrot.lane.b32.xlu0 %v1003, 32
    %v1005 = vpop.permute.xlu0 %1004
    %v1006 = vadd.f32 %v1003, %v1005
    %1007 = vrot.lane.b32.xlu0 %v1006, 64
    %v1008 = vpop.permute.xlu0 %1007
    %v1009 = vadd.f32 %v1006, %v1008
    %v1010 = vmul.f32 %v1009, 0.001953125
    %v1011 = vlaneseq
    %v1012 = vshrl.u32 %v1011, 7
    %v1013 = vsub.s32 0, %v1012
    %v1014 = vrot.slane %v1010, %v1013
    %v1015 = vsub.f32 %v985, %v1014
    %v1016 = vsub.f32 %v986, %v1014
    %v1017 = vsub.f32 %v987, %v1014
    %v1018 = vsub.f32 %v988, %v1014
    %v1019 = vmul.f32 %v1015, %v1015
    %v1020 = vmul.f32 %v1016, %v1016
    %v1021 = vmul.f32 %v1017, %v1017
    %v1022 = vmul.f32 %v1018, %v1018
    %v1023 = vadd.f32 %v1019, %v1020
    %v1024 = vadd.f32 %v1023, %v1021
    %v1025 = vadd.f32 %v1024, %v1022
    %v1026 = vrot.slane %v1025, 4
    %v1027 = vadd.f32 %v1025, %v1026
    %v1028 = vrot.slane %v1027, 2
    %v1029 = vadd.f32 %v1027, %v1028
    %v1030 = vrot.slane %v1029, 1
    %v1031 = vadd.f32 %v1029, %v1030
    %1032 = vrot.lane.b32.xlu0 %v1031, 8
    %v1033 = vpop.permute.xlu0 %1032
    %v1034 = vadd.f32 %v1031, %v1033
    %1035 = vrot.lane.b32.xlu0 %v1034, 16
    %v1036 = vpop.permute.xlu0 %1035
    %v1037 = vadd.f32 %v1034, %v1036
    %1038 = vrot.lane.b32.xlu0 %v1037, 32
    %v1039 = vpop.permute.xlu0 %1038
    %v1040 = vadd.f32 %v1037, %v1039
    %1041 = vrot.lane.b32.xlu0 %v1040, 64
    %v1042 = vpop.permute.xlu0 %1041
    %v1043 = vadd.f32 %v1040, %v1042
    %v1044 = vmul.f32 %v1043, 0.001953125
    %v1045 = vadd.f32 %v1044, 1e-05
    %v1046 = vrsqrt.pop %v1045
    %v1047 = vmul.f32 %v128, %v1046
    %v1049 = vlaneseq
    %v1050 = vshrl.u32 %v1049, 7
    %v1051 = vsub.s32 0, %v1050
    %v1052 = vrot.slane %v1047, %v1051
    %v1054 = vmul.f32 %v1015, %v1052
    %v1055 = vmul.f32 %v1016, %v1052
    %v1056 = vmul.f32 %v1017, %v1052
    %v1057 = vmul.f32 %v1018, %v1052
    %v1059 = vlaneseq
    %v1060 = vshrl.u32 %v1059, 7
    %v1061 = vsub.s32 0, %v1060
    %v1062 = vrot.slane %v129, %v1061
    %v1064 = vadd.f32 %v1054, %v1062
    %v1065 = vadd.f32 %v1055, %v1062
    %v1066 = vadd.f32 %v1056, %v1062
    %v1067 = vadd.f32 %v1057, %v1062
    %v1068 = vadd.f32 %v1064, %v122
    %v1069 = vadd.f32 %v1065, %v123
    %v1070 = vadd.f32 %v1066, %v124
    %v1071 = vadd.f32 %v1067, %v125
    %v1072 = vmax.f32 %v1068, 0.0
    %v1073 = vmax.f32 %v1069, 0.0
    %v1074 = vmax.f32 %v1070, 0.0
    %v1075 = vmax.f32 %v1071, 0.0
    %1076 = vst [vmem:[#allocation8] sm:$0xff] %v1072
    %1077 = vst [vmem:[#allocation8 + $0x8] sm:$0xff] %v1073
    %1078 = vst [vmem:[#allocation8 + $0x10] sm:$0xff] %v1074
    %1079 = vst [vmem:[#allocation8 + $0x18] sm:$0xff] %v1075
    // Predicated region
    $region42: #{tpu_custom_call.1} parent=1 // pred_check
      _
    $region43: #{tpu_custom_call.1} parent=1 // pred_check_branch
      %1081 = sbr.rel (0) target = $region45
    $region44: #{tpu_custom_call.1} parent=1 // pred_region
      %s1083 = ssub.s32 512, 512
      %1084 = vsyncadd [#allocation4], %s1083
      %s1085 = sshll.u32 [#allocation8], 4
      %s1086 = int_to_ptr.vmem [resolvable:$true] %s1085
      %1091 = dma.vmem_to_hbm [thread:$0]  %s1086, 512, %s7, [#allocation4], 128, 128, 8
    $region45: #{tpu_custom_call.1} parent=1 // pred_fallthru
      _
    // Predicated region
    $region46: #{tpu_custom_call.1} parent=1 // pred_check
      _
    $region47: #{tpu_custom_call.1} parent=1 // pred_check_branch
      %1093 = sbr.rel (0) target = $region49
    $region48: #{tpu_custom_call.1} parent=1 // pred_region
      %1094 = dma.done [#allocation4], 512
    $region49: #{tpu_custom_call.1} parent=1 // pred_fallthru
      _
    %1095 = vsyncpa [#allocation3], 1
    %1096 = vsyncpa [#allocation6], 1
    %1097 = vsyncpa [#allocation4], 1

</llo_original>
